<compile_context>
chip_gen: v7x
topology: tpu7x:2x2x1
jax: 0.10.0
libtpu: 0.0.40
codegen_flags: <defaults>
</compile_context>

<pallas_src>
import functools

import jax
import jax.numpy as jnp
import numpy as np
from jax.experimental import pallas as pl
from jax.experimental.pallas import tpu as pltpu

_LANES = 128
_TARGET_BLOCK_BYTES = 2 * 1024 * 1024   # native-dtype bytes per input block
_MIN_GRID_STEPS = 4                     # pipeline overlap + v7x 2-TC split
_VMEM_LIMIT_BYTES = 32 * 1024 * 1024    # safe on v5e/v6e (128 MiB) and v7x (64 MiB)


def _round_up(x: int, m: int) -> int:
    return -(-x // m) * m


@functools.lru_cache(maxsize=None)
def _sum_matrix(g: int, n: int) -> jax.Array:
    # S[k, j] = 1 iff lanes k and j belong to the same choice set of size n.
    return jnp.asarray(
        np.kron(np.eye(g, dtype=np.float32), np.ones((n, n), np.float32)))


def _logit_kernel_packed(u_ref, sum_mat_ref, p_ref):
    # u_ref: (TM, G*N) native dtype; sum_mat_ref: (G*N, G*N) f32 block-diag ones.
    u = u_ref[...].astype(jnp.float32)
    # TODO(synk): torch semantics = no max-subtraction; exp overflows to inf for
    # utilities >~88 (f32), exactly as in the reference module.
    e = jnp.exp(u)                                            # EUP, lane-dense
    # Per-choice-set sums broadcast to every lane of the group via one small
    # resident MXU matmul (no in-kernel lane reshapes / masked reductions).
    # Precision pinned so the packed denominator is ~f32-exact on every chip.
    # (v5e-only fallback if MXU ever becomes co-critical: bf16 sum_mat + bf16 e.)
    s = jnp.dot(e, sum_mat_ref[...],
                precision=jax.lax.Precision.HIGHEST,
                preferred_element_type=jnp.float32)
    r = pl.reciprocal(s, approx=True)                         # EUP vrcp
    r = r * (2.0 - s * r)                                     # Newton step -> ~f32 exact
    p_ref[...] = (e * r).astype(p_ref.dtype)


def _logit_kernel_full(u_ref, p_ref):
    # Unpacked path (N >= 128 or N does not divide 128): plain row softmax.
    u = u_ref[...].astype(jnp.float32)
    e = jnp.exp(u)
    s = jnp.sum(e, axis=-1, keepdims=True)                    # XLU reduce
    r = pl.reciprocal(s, approx=True)
    r = r * (2.0 - s * r)
    p_ref[...] = (e * r).astype(p_ref.dtype)


def logit_layer(utility: jax.Array) -> jax.Array:
    """Pallas TPU LogitLayer.forward (softmax over the last axis)."""
    orig_shape = utility.shape
    orig_dtype = utility.dtype
    n = int(orig_shape[-1])
    rows = int(np.prod(orig_shape[:-1], dtype=np.int64)) if len(orig_shape) > 1 else 1

    # Lane packing: G consecutive choice sets side by side so the minor dim of
    # every block is exactly 128 lanes (full vregs, unmasked vst).
    g = _LANES // n if (n < _LANES and _LANES % n == 0) else 1
    # TODO(synk): N<128 that doesn't divide 128 (e.g. 50) uses the lane-sparse
    # fallback; padding choice sets to a divisor of 128 with -inf would need a
    # wrapper-side repack (its own HBM pass), so it is not done here.
    lanes = g * n

    # Sublane granularity scales with dtype packing (f32: 8, bf16: 16, int8: 32).
    itemsize = jnp.dtype(orig_dtype).itemsize
    sub = 8 * max(1, 4 // itemsize)

    # Tiny tail pad only when rows is not a multiple of g (<= g-1 padded rows);
    # no full-array padding to a tile multiple, no output re-slice HBM pass.
    rows_g = _round_up(rows, g)
    packed_rows = rows_g // g

    # Native-dtype block ~2 MiB, but capped so the grid has >= _MIN_GRID_STEPS
    # steps (pipeline overlap; lets v7x split the parallel axis over 2 TCs).
    tm_cap = max(sub, (_TARGET_BLOCK_BYTES // (lanes * itemsize)) // sub * sub)
    tm_steps = max(sub, _round_up(-(-packed_rows // _MIN_GRID_STEPS), sub))
    tm = max(sub, min(tm_cap, tm_steps))
    if tm > packed_rows:
        tm = packed_rows                     # tiny input: one full-extent block
    grid_steps = -(-packed_rows // tm)       # ragged last block: OOB reads stay
    grid = (grid_steps,)                     # in discarded rows (row-local math),
                                             # OOB writes are masked by Pallas.

    u2d = utility.reshape(rows, n)           # native dtype, no extra copy
    if rows_g != rows:
        u2d = jnp.pad(u2d, ((0, rows_g - rows), (0, 0)))     # exp(0)=1, discarded rows
    u_packed = u2d.reshape(packed_rows, lanes)

    compiler_params = pltpu.CompilerParams(
        dimension_semantics=("parallel",),
        vmem_limit_bytes=_VMEM_LIMIT_BYTES,
    )

    if g > 1:
        out = pl.pallas_call(
            _logit_kernel_packed,
            out_shape=jax.ShapeDtypeStruct((packed_rows, lanes), orig_dtype),
            grid_spec=pltpu.PrefetchScalarGridSpec(
                num_scalar_prefetch=0,
                grid=grid,
                in_specs=[
                    pl.BlockSpec((tm, lanes), lambda i: (i, 0)),
                    pl.BlockSpec((lanes, lanes), lambda i: (0, 0)),  # resident in VMEM
                ],
                out_specs=pl.BlockSpec((tm, lanes), lambda i: (i, 0)),
            ),
            compiler_params=compiler_params,
        )(u_packed, _sum_matrix(g, n))
    else:
        out = pl.pallas_call(
            _logit_kernel_full,
            out_shape=jax.ShapeDtypeStruct((packed_rows, lanes), orig_dtype),
            grid_spec=pltpu.PrefetchScalarGridSpec(
                num_scalar_prefetch=0,
                grid=grid,
                in_specs=[pl.BlockSpec((tm, lanes), lambda i: (i, 0))],
                out_specs=pl.BlockSpec((tm, lanes), lambda i: (i, 0)),
            ),
            compiler_params=compiler_params,
        )(u_packed)

    out = out.reshape(rows_g, n)
    if rows_g != rows:
        out = out[:rows]                     # only the <= g-1 padded tail rows
    return out.reshape(orig_shape)


if __name__ == "__main__":
    def ref_softmax(x):
        e = jnp.exp(x.astype(jnp.float32))
        return e / jnp.sum(e, axis=-1, keepdims=True)

    key = jax.random.PRNGKey(0)
    k1, k2, k3, k4, k5 = jax.random.split(key, 5)

    # Case 1: natural utility shape (batch=2, seq=8, alternatives=32), f32 packed path.
    x1 = jax.random.normal(k1, (2, 8, 32), dtype=jnp.float32)
    p1 = logit_layer(x1)
    jax.block_until_ready(p1)
    assert p1.shape == x1.shape and p1.dtype == x1.dtype
    assert jnp.allclose(p1, ref_softmax(x1), atol=1e-5, rtol=1e-5)
    assert jnp.allclose(jnp.sum(p1, axis=-1), 1.0, atol=1e-4)

    # Case 2: rows not a multiple of the packing factor -> tiny tail-pad path.
    x2 = jax.random.normal(k2, (3, 5, 32), dtype=jnp.float32)
    p2 = logit_layer(x2)
    jax.block_until_ready(p2)
    assert jnp.allclose(p2, ref_softmax(x2), atol=1e-5, rtol=1e-5)

    # Case 3: multi-step grid with a ragged last block (no full-array padding).
    x3 = jax.random.normal(k3, (2, 100, 32), dtype=jnp.float32)
    p3 = logit_layer(x3)
    jax.block_until_ready(p3)
    assert jnp.allclose(p3, ref_softmax(x3), atol=1e-5, rtol=1e-5)

    # Case 4: bf16 stays bf16 end-to-end (no wrapper-side f32 round trip).
    x4 = jax.random.normal(k4, (2, 8, 32)).astype(jnp.bfloat16)
    p4 = logit_layer(x4)
    jax.block_until_ready(p4)
    assert p4.dtype == jnp.bfloat16
    assert jnp.allclose(p4.astype(jnp.float32), ref_softmax(x4), atol=1e-2)

    # Case 5: wide choice set (N=200 does not divide 128 -> unpacked fallback).
    x5 = jax.random.normal(k5, (2, 4, 200), dtype=jnp.float32)
    p5 = logit_layer(x5)
    jax.block_until_ready(p5)
    assert jnp.allclose(p5, ref_softmax(x5), atol=1e-5, rtol=1e-5)

    print("KERNEL_OK")
</pallas_src>

<mosaic_0001>
module attributes {stable_mosaic.version = 11 : i64} {
  func.func @_logit_kernel_packed(%arg0: i32, %arg1: memref<4x128xf32, #tpu.memory_space<vmem>>, %arg2: memref<128x128xf32, #tpu.memory_space<vmem>>, %arg3: memref<4x128xf32, #tpu.memory_space<vmem>>) attributes {dimension_semantics = [#tpu.dimension_semantics<parallel>], iteration_bounds = array<i64: 1>, scalar_prefetch = 0 : i64, scratch_operands = 0 : i64, tpu.core_type = #tpu.core_type<tc>, window_params = [{transform_indices = @transform_0, window_bounds = array<i64: 4, 128>}, {pipeline_mode = #tpu.pipeline_mode<synchronous>, transform_indices = @transform_1, window_bounds = array<i64: 128, 128>}, {transform_indices = @transform_2, window_bounds = array<i64: 4, 128>}]} {
    %c0 = arith.constant 0 : index
    %c0_0 = arith.constant 0 : index
    %0 = vector.load %arg1[%c0, %c0_0] : memref<4x128xf32, #tpu.memory_space<vmem>>, vector<4x128xf32>
    %1 = math.exp %0 : vector<4x128xf32>
    %c0_1 = arith.constant 0 : index
    %c0_2 = arith.constant 0 : index
    %2 = vector.load %arg2[%c0_1, %c0_2] : memref<128x128xf32, #tpu.memory_space<vmem>>, vector<128x128xf32>
    %cst = arith.constant dense<0.000000e+00> : vector<4x128xf32>
    %3 = tpu.matmul %1, %2, %cst {dimension_numbers = #tpu.dot_dimension_numbers<[1], [0], [0], [1], [0, 0, 1, 1], [], []>, precision = #tpu.contract_precision<fp32>} : vector<4x128xf32>, vector<128x128xf32>, vector<4x128xf32> -> vector<4x128xf32>
    %4 = tpu.reciprocal %3 {approx = true} : vector<4x128xf32> -> vector<4x128xf32>
    %5 = arith.mulf %3, %4 : vector<4x128xf32>
    %cst_3 = arith.constant 2.000000e+00 : f32
    %6 = vector.broadcast %cst_3 : f32 to vector<4x128xf32>
    %7 = arith.subf %6, %5 : vector<4x128xf32>
    %8 = arith.mulf %4, %7 : vector<4x128xf32>
    %9 = arith.mulf %1, %8 : vector<4x128xf32>
    %c0_4 = arith.constant 0 : index
    %c0_5 = arith.constant 0 : index
    %10 = vector.load %arg3[%c0_4, %c0_5] : memref<4x128xf32, #tpu.memory_space<vmem>>, vector<4x128xf32>
    tpu.vector_store %arg3[%c0_4, %c0_5], %9 {strides = array<i32>} : memref<4x128xf32, #tpu.memory_space<vmem>>, vector<4x128xf32>,
    return
  }
  func.func @transform_0(%arg0: i32) -> (i32, i32) {
    %c0_i32 = arith.constant 0 : i32
    %c0_i32_0 = arith.constant 0 : i32
    return %arg0, %c0_i32 : i32, i32
  }
  func.func @transform_1(%arg0: i32) -> (i32, i32) {
    %c0_i32 = arith.constant 0 : i32
    %c0_i32_0 = arith.constant 0 : i32
    %c0_i32_1 = arith.constant 0 : i32
    return %c0_i32, %c0_i32_0 : i32, i32
  }
  func.func @transform_2(%arg0: i32) -> (i32, i32) {
    %c0_i32 = arith.constant 0 : i32
    %c0_i32_0 = arith.constant 0 : i32
    return %arg0, %c0_i32 : i32, i32
  }
}

</mosaic_0001>

<llo_original>
// kernel: tpu_custom_call.1
$region0: #{tpu_custom_call.1}
  #allocation0 [shape = 'u32[]', space=smem, size = 0x4, offset = 0x4, fixed_abs, tag = 'smem constant byte address 0x4 - core index']
  #allocation1 [shape = 'u32[144,128]{1,0:T(1,128)}', space=vmem, size = 0x12000, scoped, tag = 'internal scratch']
  %s0 = inlined_call_operand.hbm [shape: f32[4,128], index: 0, kind: input, shape index: {}]
  %s1 = inlined_call_operand.hbm [shape: f32[128,128], index: 1, kind: input, shape index: {}]
  %s2 = inlined_call_operand.hbm [shape: f32[4,128], index: 2, kind: output, shape index: {}]
  %s3 = sld [smem:[#allocation0]]
  $region26: #{tpu_custom_call.1} parent=0
    _
  %s5 = ssub.s32 1, %s3
  %s6 = scalar_select 0, %s5, %s3
  $region1: #{tpu_custom_call.1} parent=0
    #allocation2 [shape = 'u8[2048]{0}', space=vmem, size = 0x800, scoped, tag = 'input window, operand 0, single buffered']
    #allocation3 [shape = 's32[1]{0}', space=sflag, size = 0x4, scoped, tag = 'scoped memory for tpu_custom_call.1']
    #allocation4 [shape = 's32[1]{0}', space=sflag, size = 0x4, scoped, tag = 'scoped memory for tpu_custom_call.1']
    #allocation5 [shape = 'u8[65536]{0}', space=vmem, size = 0x10000, scoped, tag = 'input window, operand 1, single buffered']
    #allocation6 [shape = 's32[1]{0}', space=sflag, size = 0x4, scoped, tag = 'scoped memory for tpu_custom_call.1']
    #allocation7 [shape = 'u8[2048]{0}', space=vmem, size = 0x800, scoped, tag = 'output window, operand 0, single buffered']
    %7 = vsyncpa [#allocation3], 0
    %8 = vsyncpa [#allocation6], 0
    %9 = vsyncpa [#allocation4], 0
    // Predicated region
    $region2: #{tpu_custom_call.1} parent=1 // pred_check
      _
    $region3: #{tpu_custom_call.1} parent=1 // pred_check_branch
      %11 = sbr.rel (0) target = $region5
    $region4: #{tpu_custom_call.1} parent=1 // pred_region
      %s13 = ssub.s32 64, 64
      %14 = vsyncadd [#allocation3], %s13
      %s16 = sshll.u32 [#allocation2], 4
      %s17 = int_to_ptr.vmem [resolvable:$true] %s16
      %19 = dma.hbm_to_vmem [thread:$0]  %s0, 64, %s17, [#allocation3]
    $region5: #{tpu_custom_call.1} parent=1 // pred_fallthru
      _
    // Predicated region
    $region6: #{tpu_custom_call.1} parent=1 // pred_check
      _
    $region7: #{tpu_custom_call.1} parent=1 // pred_check_branch
      %21 = sbr.rel (0) target = $region9
    $region8: #{tpu_custom_call.1} parent=1 // pred_region
      %s23 = ssub.s32 2048, 2048
      %24 = vsyncadd [#allocation6], %s23
      %s25 = sshll.u32 [#allocation5], 4
      %s26 = int_to_ptr.vmem [resolvable:$true] %s25
      %31 = dma.hbm_to_vmem [thread:$0]  %s1, 2048, %s26, [#allocation6], 128, 128, 8
    $region9: #{tpu_custom_call.1} parent=1 // pred_fallthru
      _
    // Predicated region
    $region10: #{tpu_custom_call.1} parent=1 // pred_check
      _
    $region11: #{tpu_custom_call.1} parent=1 // pred_check_branch
      %33 = sbr.rel (0) target = $region13
    $region12: #{tpu_custom_call.1} parent=1 // pred_region
      %34 = dma.done [#allocation3], 64
    $region13: #{tpu_custom_call.1} parent=1 // pred_fallthru
      _
    // Predicated region
    $region14: #{tpu_custom_call.1} parent=1 // pred_check
      _
    $region15: #{tpu_custom_call.1} parent=1 // pred_check_branch
      %36 = sbr.rel (0) target = $region17
    $region16: #{tpu_custom_call.1} parent=1 // pred_region
      %37 = dma.done [#allocation6], 2048
    $region17: #{tpu_custom_call.1} parent=1 // pred_fallthru
      _
    %v38 = vld [vmem:[#allocation2] sm:$0xf]
    %v39 = vmul.f32 %v38, 1.442695
    %v40 = vpow.pop %v39
    %v41 = vld [vmem:[#allocation5] sm:$0xff]
    %v42 = vld [vmem:[#allocation5 + $0x8] sm:$0xff]
    %v43 = vld [vmem:[#allocation5 + $0x10] sm:$0xff]
    %v44 = vld [vmem:[#allocation5 + $0x18] sm:$0xff]
    %v45 = vld [vmem:[#allocation5 + $0x20] sm:$0xff]
    %v46 = vld [vmem:[#allocation5 + $0x28] sm:$0xff]
    %v47 = vld [vmem:[#allocation5 + $0x30] sm:$0xff]
    %v48 = vld [vmem:[#allocation5 + $0x38] sm:$0xff]
    %v49 = vld [vmem:[#allocation5 + $0x40] sm:$0xff]
    %v50 = vld [vmem:[#allocation5 + $0x48] sm:$0xff]
    %v51 = vld [vmem:[#allocation5 + $0x50] sm:$0xff]
    %v52 = vld [vmem:[#allocation5 + $0x58] sm:$0xff]
    %v53 = vld [vmem:[#allocation5 + $0x60] sm:$0xff]
    %v54 = vld [vmem:[#allocation5 + $0x68] sm:$0xff]
    %v55 = vld [vmem:[#allocation5 + $0x70] sm:$0xff]
    %v56 = vld [vmem:[#allocation5 + $0x78] sm:$0xff]
    %57 = vmatprep.subr.mxu0 0.0
    %v58 = vand.u32 %v41, 4294901760
    %59 = vmatpush1.msra.mxu0 %v58
    %60 = vmatprep.subr.mxu0 0.0
    %v61 = vand.u32 %v42, 4294901760
    %62 = vmatpush1.msra.mxu0 %v61
    %63 = vmatprep.subr.mxu0 0.0
    %v64 = vand.u32 %v43, 4294901760
    %65 = vmatpush1.msra.mxu0 %v64
    %66 = vmatprep.subr.mxu0 0.0
    %v67 = vand.u32 %v44, 4294901760
    %68 = vmatpush1.msra.mxu0 %v67
    %69 = vmatprep.subr.mxu0 0.0
    %v70 = vand.u32 %v45, 4294901760
    %71 = vmatpush1.msra.mxu0 %v70
    %72 = vmatprep.subr.mxu0 0.0
    %v73 = vand.u32 %v46, 4294901760
    %74 = vmatpush1.msra.mxu0 %v73
    %75 = vmatprep.subr.mxu0 0.0
    %v76 = vand.u32 %v47, 4294901760
    %77 = vmatpush1.msra.mxu0 %v76
    %78 = vmatprep.subr.mxu0 0.0
    %v79 = vand.u32 %v48, 4294901760
    %80 = vmatpush1.msra.mxu0 %v79
    %81 = vmatprep.subr.mxu0 0.0
    %v82 = vand.u32 %v49, 4294901760
    %83 = vmatpush1.msra.mxu0 %v82
    %84 = vmatprep.subr.mxu0 0.0
    %v85 = vand.u32 %v50, 4294901760
    %86 = vmatpush1.msra.mxu0 %v85
    %87 = vmatprep.subr.mxu0 0.0
    %v88 = vand.u32 %v51, 4294901760
    %89 = vmatpush1.msra.mxu0 %v88
    %90 = vmatprep.subr.mxu0 0.0
    %v91 = vand.u32 %v52, 4294901760
    %92 = vmatpush1.msra.mxu0 %v91
    %93 = vmatprep.subr.mxu0 0.0
    %v94 = vand.u32 %v53, 4294901760
    %95 = vmatpush1.msra.mxu0 %v94
    %96 = vmatprep.subr.mxu0 0.0
    %v97 = vand.u32 %v54, 4294901760
    %98 = vmatpush1.msra.mxu0 %v97
    %99 = vmatprep.subr.mxu0 0.0
    %v100 = vand.u32 %v55, 4294901760
    %101 = vmatpush1.msra.mxu0 %v100
    %102 = vmatprep.subr.mxu0 0.0
    %v103 = vand.u32 %v56, 4294901760
    %104 = vmatpush1.msra.mxu0 %v103
    %105 = vmatprep.subr.mxu0 0.0
    %106 = vmatpush1.msra.mxu0 0.0
    %107 = vmatprep.subr.mxu0 0.0
    %108 = vmatpush1.msra.mxu0 0.0
    %109 = vmatprep.subr.mxu0 0.0
    %110 = vmatpush1.msra.mxu0 0.0
    %111 = vmatprep.subr.mxu0 0.0
    %112 = vmatpush1.msra.mxu0 0.0
    %113 = vmatprep.subr.mxu0 0.0
    %114 = vmatpush1.msra.mxu0 0.0
    %115 = vmatprep.subr.mxu0 0.0
    %116 = vmatpush1.msra.mxu0 0.0
    %117 = vmatprep.subr.mxu0 0.0
    %118 = vmatpush1.msra.mxu0 0.0
    %119 = vmatprep.subr.mxu0 0.0
    %120 = vmatpush1.msra.mxu0 0.0
    %121 = vmatprep.subr.mxu0 0.0
    %122 = vmatpush1.msra.mxu0 0.0
    %123 = vmatprep.subr.mxu0 0.0
    %124 = vmatpush1.msra.mxu0 0.0
    %125 = vmatprep.subr.mxu0 0.0
    %126 = vmatpush1.msra.mxu0 0.0
    %127 = vmatprep.subr.mxu0 0.0
    %128 = vmatpush1.msra.mxu0 0.0
    %129 = vmatprep.subr.mxu0 0.0
    %130 = vmatpush1.msra.mxu0 0.0
    %131 = vmatprep.subr.mxu0 0.0
    %132 = vmatpush1.msra.mxu0 0.0
    %133 = vmatprep.subr.mxu0 0.0
    %134 = vmatpush1.msra.mxu0 0.0
    %135 = vmatprep.subr.mxu0 0.0
    %136 = vmatpush1.msra.mxu0 0.0
    %137 = vmatprep.mubr.f32.mxu0 0.0
    %v138 = vand.u32 %v40, 4294901760
    %v139 = vsub.f32 %v40, %v138
    %v140 = vand.u32 %v139, 4294901760
    %v141 = vsub.f32 %v139, %v140
    %v142 = vand.u32 %v141, 4294901760
    %143 = vmatmul.mubr.f32.gmra.mrb[0].mxu0 %v142
    %v144 = vpop.f32.mrb[0].mxu0
    %v145 = vadd.f32 0.0, %v144
    %v146 = vpop.f32.mrb[0].mxu0
    %147 = vdwg.mxu0
    %148 = vmatprep.subr.mxu0 0.0
    %v149 = vand.u32 %v41, 4294901760
    %v150 = vsub.f32 %v41, %v149
    %v151 = vand.u32 %v150, 4294901760
    %v152 = vsub.f32 %v150, %v151
    %v153 = vand.u32 %v152, 4294901760
    %154 = vmatpush1.msra.mxu0 %v153
    %155 = vmatprep.subr.mxu0 0.0
    %v156 = vand.u32 %v42, 4294901760
    %v157 = vsub.f32 %v42, %v156
    %v158 = vand.u32 %v157, 4294901760
    %v159 = vsub.f32 %v157, %v158
    %v160 = vand.u32 %v159, 4294901760
    %161 = vmatpush1.msra.mxu0 %v160
    %162 = vmatprep.subr.mxu0 0.0
    %v163 = vand.u32 %v43, 4294901760
    %v164 = vsub.f32 %v43, %v163
    %v165 = vand.u32 %v164, 4294901760
    %v166 = vsub.f32 %v164, %v165
    %v167 = vand.u32 %v166, 4294901760
    %168 = vmatpush1.msra.mxu0 %v167
    %169 = vmatprep.subr.mxu0 0.0
    %v170 = vand.u32 %v44, 4294901760
    %v171 = vsub.f32 %v44, %v170
    %v172 = vand.u32 %v171, 4294901760
    %v173 = vsub.f32 %v171, %v172
    %v174 = vand.u32 %v173, 4294901760
    %175 = vmatpush1.msra.mxu0 %v174
    %176 = vmatprep.subr.mxu0 0.0
    %v177 = vand.u32 %v45, 4294901760
    %v178 = vsub.f32 %v45, %v177
    %v179 = vand.u32 %v178, 4294901760
    %v180 = vsub.f32 %v178, %v179
    %v181 = vand.u32 %v180, 4294901760
    %182 = vmatpush1.msra.mxu0 %v181
    %183 = vmatprep.subr.mxu0 0.0
    %v184 = vand.u32 %v46, 4294901760
    %v185 = vsub.f32 %v46, %v184
    %v186 = vand.u32 %v185, 4294901760
    %v187 = vsub.f32 %v185, %v186
    %v188 = vand.u32 %v187, 4294901760
    %189 = vmatpush1.msra.mxu0 %v188
    %190 = vmatprep.subr.mxu0 0.0
    %v191 = vand.u32 %v47, 4294901760
    %v192 = vsub.f32 %v47, %v191
    %v193 = vand.u32 %v192, 4294901760
    %v194 = vsub.f32 %v192, %v193
    %v195 = vand.u32 %v194, 4294901760
    %196 = vmatpush1.msra.mxu0 %v195
    %197 = vmatprep.subr.mxu0 0.0
    %v198 = vand.u32 %v48, 4294901760
    %v199 = vsub.f32 %v48, %v198
    %v200 = vand.u32 %v199, 4294901760
    %v201 = vsub.f32 %v199, %v200
    %v202 = vand.u32 %v201, 4294901760
    %203 = vmatpush1.msra.mxu0 %v202
    %204 = vmatprep.subr.mxu0 0.0
    %v205 = vand.u32 %v49, 4294901760
    %v206 = vsub.f32 %v49, %v205
    %v207 = vand.u32 %v206, 4294901760
    %v208 = vsub.f32 %v206, %v207
    %v209 = vand.u32 %v208, 4294901760
    %210 = vmatpush1.msra.mxu0 %v209
    %211 = vmatprep.subr.mxu0 0.0
    %v212 = vand.u32 %v50, 4294901760
    %v213 = vsub.f32 %v50, %v212
    %v214 = vand.u32 %v213, 4294901760
    %v215 = vsub.f32 %v213, %v214
    %v216 = vand.u32 %v215, 4294901760
    %217 = vmatpush1.msra.mxu0 %v216
    %218 = vmatprep.subr.mxu0 0.0
    %v219 = vand.u32 %v51, 4294901760
    %v220 = vsub.f32 %v51, %v219
    %v221 = vand.u32 %v220, 4294901760
    %v222 = vsub.f32 %v220, %v221
    %v223 = vand.u32 %v222, 4294901760
    %224 = vmatpush1.msra.mxu0 %v223
    %225 = vmatprep.subr.mxu0 0.0
    %v226 = vand.u32 %v52, 4294901760
    %v227 = vsub.f32 %v52, %v226
    %v228 = vand.u32 %v227, 4294901760
    %v229 = vsub.f32 %v227, %v228
    %v230 = vand.u32 %v229, 4294901760
    %231 = vmatpush1.msra.mxu0 %v230
    %232 = vmatprep.subr.mxu0 0.0
    %v233 = vand.u32 %v53, 4294901760
    %v234 = vsub.f32 %v53, %v233
    %v235 = vand.u32 %v234, 4294901760
    %v236 = vsub.f32 %v234, %v235
    %v237 = vand.u32 %v236, 4294901760
    %238 = vmatpush1.msra.mxu0 %v237
    %239 = vmatprep.subr.mxu0 0.0
    %v240 = vand.u32 %v54, 4294901760
    %v241 = vsub.f32 %v54, %v240
    %v242 = vand.u32 %v241, 4294901760
    %v243 = vsub.f32 %v241, %v242
    %v244 = vand.u32 %v243, 4294901760
    %245 = vmatpush1.msra.mxu0 %v244
    %246 = vmatprep.subr.mxu0 0.0
    %v247 = vand.u32 %v55, 4294901760
    %v248 = vsub.f32 %v55, %v247
    %v249 = vand.u32 %v248, 4294901760
    %v250 = vsub.f32 %v248, %v249
    %v251 = vand.u32 %v250, 4294901760
    %252 = vmatpush1.msra.mxu0 %v251
    %253 = vmatprep.subr.mxu0 0.0
    %v254 = vand.u32 %v56, 4294901760
    %v255 = vsub.f32 %v56, %v254
    %v256 = vand.u32 %v255, 4294901760
    %v257 = vsub.f32 %v255, %v256
    %v258 = vand.u32 %v257, 4294901760
    %259 = vmatpush1.msra.mxu0 %v258
    %260 = vmatprep.subr.mxu0 0.0
    %261 = vmatpush1.msra.mxu0 0.0
    %262 = vmatprep.subr.mxu0 0.0
    %263 = vmatpush1.msra.mxu0 0.0
    %264 = vmatprep.subr.mxu0 0.0
    %265 = vmatpush1.msra.mxu0 0.0
    %266 = vmatprep.subr.mxu0 0.0
    %267 = vmatpush1.msra.mxu0 0.0
    %268 = vmatprep.subr.mxu0 0.0
    %269 = vmatpush1.msra.mxu0 0.0
    %270 = vmatprep.subr.mxu0 0.0
    %271 = vmatpush1.msra.mxu0 0.0
    %272 = vmatprep.subr.mxu0 0.0
    %273 = vmatpush1.msra.mxu0 0.0
    %274 = vmatprep.subr.mxu0 0.0
    %275 = vmatpush1.msra.mxu0 0.0
    %276 = vmatprep.subr.mxu0 0.0
    %277 = vmatpush1.msra.mxu0 0.0
    %278 = vmatprep.subr.mxu0 0.0
    %279 = vmatpush1.msra.mxu0 0.0
    %280 = vmatprep.subr.mxu0 0.0
    %281 = vmatpush1.msra.mxu0 0.0
    %282 = vmatprep.subr.mxu0 0.0
    %283 = vmatpush1.msra.mxu0 0.0
    %284 = vmatprep.subr.mxu0 0.0
    %285 = vmatpush1.msra.mxu0 0.0
    %286 = vmatprep.subr.mxu0 0.0
    %287 = vmatpush1.msra.mxu0 0.0
    %288 = vmatprep.subr.mxu0 0.0
    %289 = vmatpush1.msra.mxu0 0.0
    %290 = vmatprep.subr.mxu0 0.0
    %291 = vmatpush1.msra.mxu0 0.0
    %292 = vmatprep.mubr.f32.mxu0 0.0
    %v293 = vand.u32 %v40, 4294901760
    %294 = vmatmul.mubr.f32.gmra.mrb[0].mxu0 %v293
    %v295 = vpop.f32.mrb[0].mxu0
    %v296 = vadd.f32 %v145, %v295
    %v297 = vpop.f32.mrb[0].mxu0
    %298 = vdwg.mxu0
    %299 = vmatprep.subr.mxu0 0.0
    %v300 = vand.u32 %v41, 4294901760
    %v301 = vsub.f32 %v41, %v300
    %302 = vmatpush1.msra.mxu0 %v301
    %303 = vmatprep.subr.mxu0 0.0
    %v304 = vand.u32 %v42, 4294901760
    %v305 = vsub.f32 %v42, %v304
    %306 = vmatpush1.msra.mxu0 %v305
    %307 = vmatprep.subr.mxu0 0.0
    %v308 = vand.u32 %v43, 4294901760
    %v309 = vsub.f32 %v43, %v308
    %310 = vmatpush1.msra.mxu0 %v309
    %311 = vmatprep.subr.mxu0 0.0
    %v312 = vand.u32 %v44, 4294901760
    %v313 = vsub.f32 %v44, %v312
    %314 = vmatpush1.msra.mxu0 %v313
    %315 = vmatprep.subr.mxu0 0.0
    %v316 = vand.u32 %v45, 4294901760
    %v317 = vsub.f32 %v45, %v316
    %318 = vmatpush1.msra.mxu0 %v317
    %319 = vmatprep.subr.mxu0 0.0
    %v320 = vand.u32 %v46, 4294901760
    %v321 = vsub.f32 %v46, %v320
    %322 = vmatpush1.msra.mxu0 %v321
    %323 = vmatprep.subr.mxu0 0.0
    %v324 = vand.u32 %v47, 4294901760
    %v325 = vsub.f32 %v47, %v324
    %326 = vmatpush1.msra.mxu0 %v325
    %327 = vmatprep.subr.mxu0 0.0
    %v328 = vand.u32 %v48, 4294901760
    %v329 = vsub.f32 %v48, %v328
    %330 = vmatpush1.msra.mxu0 %v329
    %331 = vmatprep.subr.mxu0 0.0
    %v332 = vand.u32 %v49, 4294901760
    %v333 = vsub.f32 %v49, %v332
    %334 = vmatpush1.msra.mxu0 %v333
    %335 = vmatprep.subr.mxu0 0.0
    %v336 = vand.u32 %v50, 4294901760
    %v337 = vsub.f32 %v50, %v336
    %338 = vmatpush1.msra.mxu0 %v337
    %339 = vmatprep.subr.mxu0 0.0
    %v340 = vand.u32 %v51, 4294901760
    %v341 = vsub.f32 %v51, %v340
    %342 = vmatpush1.msra.mxu0 %v341
    %343 = vmatprep.subr.mxu0 0.0
    %v344 = vand.u32 %v52, 4294901760
    %v345 = vsub.f32 %v52, %v344
    %346 = vmatpush1.msra.mxu0 %v345
    %347 = vmatprep.subr.mxu0 0.0
    %v348 = vand.u32 %v53, 4294901760
    %v349 = vsub.f32 %v53, %v348
    %350 = vmatpush1.msra.mxu0 %v349
    %351 = vmatprep.subr.mxu0 0.0
    %v352 = vand.u32 %v54, 4294901760
    %v353 = vsub.f32 %v54, %v352
    %354 = vmatpush1.msra.mxu0 %v353
    %355 = vmatprep.subr.mxu0 0.0
    %v356 = vand.u32 %v55, 4294901760
    %v357 = vsub.f32 %v55, %v356
    %358 = vmatpush1.msra.mxu0 %v357
    %359 = vmatprep.subr.mxu0 0.0
    %v360 = vand.u32 %v56, 4294901760
    %v361 = vsub.f32 %v56, %v360
    %362 = vmatpush1.msra.mxu0 %v361
    %363 = vmatprep.subr.mxu0 0.0
    %364 = vmatpush1.msra.mxu0 0.0
    %365 = vmatprep.subr.mxu0 0.0
    %366 = vmatpush1.msra.mxu0 0.0
    %367 = vmatprep.subr.mxu0 0.0
    %368 = vmatpush1.msra.mxu0 0.0
    %369 = vmatprep.subr.mxu0 0.0
    %370 = vmatpush1.msra.mxu0 0.0
    %371 = vmatprep.subr.mxu0 0.0
    %372 = vmatpush1.msra.mxu0 0.0
    %373 = vmatprep.subr.mxu0 0.0
    %374 = vmatpush1.msra.mxu0 0.0
    %375 = vmatprep.subr.mxu0 0.0
    %376 = vmatpush1.msra.mxu0 0.0
    %377 = vmatprep.subr.mxu0 0.0
    %378 = vmatpush1.msra.mxu0 0.0
    %379 = vmatprep.subr.mxu0 0.0
    %380 = vmatpush1.msra.mxu0 0.0
    %381 = vmatprep.subr.mxu0 0.0
    %382 = vmatpush1.msra.mxu0 0.0
    %383 = vmatprep.subr.mxu0 0.0
    %384 = vmatpush1.msra.mxu0 0.0
    %385 = vmatprep.subr.mxu0 0.0
    %386 = vmatpush1.msra.mxu0 0.0
    %387 = vmatprep.subr.mxu0 0.0
    %388 = vmatpush1.msra.mxu0 0.0
    %389 = vmatprep.subr.mxu0 0.0
    %390 = vmatpush1.msra.mxu0 0.0
    %391 = vmatprep.subr.mxu0 0.0
    %392 = vmatpush1.msra.mxu0 0.0
    %393 = vmatprep.subr.mxu0 0.0
    %394 = vmatpush1.msra.mxu0 0.0
    %395 = vmatprep.mubr.f32.mxu0 0.0
    %v396 = vand.u32 %v40, 4294901760
    %v397 = vsub.f32 %v40, %v396
    %398 = vmatmul.mubr.f32.gmra.mrb[0].mxu0 %v397
    %v399 = vpop.f32.mrb[0].mxu0
    %v400 = vadd.f32 %v296, %v399
    %v401 = vpop.f32.mrb[0].mxu0
    %402 = vdwg.mxu0
    %403 = vmatprep.subr.mxu0 0.0
    %v404 = vand.u32 %v41, 4294901760
    %405 = vmatpush1.msra.mxu0 %v404
    %406 = vmatprep.subr.mxu0 0.0
    %v407 = vand.u32 %v42, 4294901760
    %408 = vmatpush1.msra.mxu0 %v407
    %409 = vmatprep.subr.mxu0 0.0
    %v410 = vand.u32 %v43, 4294901760
    %411 = vmatpush1.msra.mxu0 %v410
    %412 = vmatprep.subr.mxu0 0.0
    %v413 = vand.u32 %v44, 4294901760
    %414 = vmatpush1.msra.mxu0 %v413
    %415 = vmatprep.subr.mxu0 0.0
    %v416 = vand.u32 %v45, 4294901760
    %417 = vmatpush1.msra.mxu0 %v416
    %418 = vmatprep.subr.mxu0 0.0
    %v419 = vand.u32 %v46, 4294901760
    %420 = vmatpush1.msra.mxu0 %v419
    %421 = vmatprep.subr.mxu0 0.0
    %v422 = vand.u32 %v47, 4294901760
    %423 = vmatpush1.msra.mxu0 %v422
    %424 = vmatprep.subr.mxu0 0.0
    %v425 = vand.u32 %v48, 4294901760
    %426 = vmatpush1.msra.mxu0 %v425
    %427 = vmatprep.subr.mxu0 0.0
    %v428 = vand.u32 %v49, 4294901760
    %429 = vmatpush1.msra.mxu0 %v428
    %430 = vmatprep.subr.mxu0 0.0
    %v431 = vand.u32 %v50, 4294901760
    %432 = vmatpush1.msra.mxu0 %v431
    %433 = vmatprep.subr.mxu0 0.0
    %v434 = vand.u32 %v51, 4294901760
    %435 = vmatpush1.msra.mxu0 %v434
    %436 = vmatprep.subr.mxu0 0.0
    %v437 = vand.u32 %v52, 4294901760
    %438 = vmatpush1.msra.mxu0 %v437
    %439 = vmatprep.subr.mxu0 0.0
    %v440 = vand.u32 %v53, 4294901760
    %441 = vmatpush1.msra.mxu0 %v440
    %442 = vmatprep.subr.mxu0 0.0
    %v443 = vand.u32 %v54, 4294901760
    %444 = vmatpush1.msra.mxu0 %v443
    %445 = vmatprep.subr.mxu0 0.0
    %v446 = vand.u32 %v55, 4294901760
    %447 = vmatpush1.msra.mxu0 %v446
    %448 = vmatprep.subr.mxu0 0.0
    %v449 = vand.u32 %v56, 4294901760
    %450 = vmatpush1.msra.mxu0 %v449
    %451 = vmatprep.subr.mxu0 0.0
    %452 = vmatpush1.msra.mxu0 0.0
    %453 = vmatprep.subr.mxu0 0.0
    %454 = vmatpush1.msra.mxu0 0.0
    %455 = vmatprep.subr.mxu0 0.0
    %456 = vmatpush1.msra.mxu0 0.0
    %457 = vmatprep.subr.mxu0 0.0
    %458 = vmatpush1.msra.mxu0 0.0
    %459 = vmatprep.subr.mxu0 0.0
    %460 = vmatpush1.msra.mxu0 0.0
    %461 = vmatprep.subr.mxu0 0.0
    %462 = vmatpush1.msra.mxu0 0.0
    %463 = vmatprep.subr.mxu0 0.0
    %464 = vmatpush1.msra.mxu0 0.0
    %465 = vmatprep.subr.mxu0 0.0
    %466 = vmatpush1.msra.mxu0 0.0
    %467 = vmatprep.subr.mxu0 0.0
    %468 = vmatpush1.msra.mxu0 0.0
    %469 = vmatprep.subr.mxu0 0.0
    %470 = vmatpush1.msra.mxu0 0.0
    %471 = vmatprep.subr.mxu0 0.0
    %472 = vmatpush1.msra.mxu0 0.0
    %473 = vmatprep.subr.mxu0 0.0
    %474 = vmatpush1.msra.mxu0 0.0
    %475 = vmatprep.subr.mxu0 0.0
    %476 = vmatpush1.msra.mxu0 0.0
    %477 = vmatprep.subr.mxu0 0.0
    %478 = vmatpush1.msra.mxu0 0.0
    %479 = vmatprep.subr.mxu0 0.0
    %480 = vmatpush1.msra.mxu0 0.0
    %481 = vmatprep.subr.mxu0 0.0
    %482 = vmatpush1.msra.mxu0 0.0
    %483 = vmatprep.mubr.f32.mxu0 0.0
    %v484 = vand.u32 %v40, 4294901760
    %v485 = vsub.f32 %v40, %v484
    %v486 = vand.u32 %v485, 4294901760
    %487 = vmatmul.mubr.f32.gmra.mrb[0].mxu0 %v486
    %v488 = vpop.f32.mrb[0].mxu0
    %v489 = vadd.f32 %v400, %v488
    %v490 = vpop.f32.mrb[0].mxu0
    %491 = vdwg.mxu0
    %492 = vmatprep.subr.mxu0 0.0
    %v493 = vand.u32 %v41, 4294901760
    %v494 = vsub.f32 %v41, %v493
    %v495 = vand.u32 %v494, 4294901760
    %496 = vmatpush1.msra.mxu0 %v495
    %497 = vmatprep.subr.mxu0 0.0
    %v498 = vand.u32 %v42, 4294901760
    %v499 = vsub.f32 %v42, %v498
    %v500 = vand.u32 %v499, 4294901760
    %501 = vmatpush1.msra.mxu0 %v500
    %502 = vmatprep.subr.mxu0 0.0
    %v503 = vand.u32 %v43, 4294901760
    %v504 = vsub.f32 %v43, %v503
    %v505 = vand.u32 %v504, 4294901760
    %506 = vmatpush1.msra.mxu0 %v505
    %507 = vmatprep.subr.mxu0 0.0
    %v508 = vand.u32 %v44, 4294901760
    %v509 = vsub.f32 %v44, %v508
    %v510 = vand.u32 %v509, 4294901760
    %511 = vmatpush1.msra.mxu0 %v510
    %512 = vmatprep.subr.mxu0 0.0
    %v513 = vand.u32 %v45, 4294901760
    %v514 = vsub.f32 %v45, %v513
    %v515 = vand.u32 %v514, 4294901760
    %516 = vmatpush1.msra.mxu0 %v515
    %517 = vmatprep.subr.mxu0 0.0
    %v518 = vand.u32 %v46, 4294901760
    %v519 = vsub.f32 %v46, %v518
    %v520 = vand.u32 %v519, 4294901760
    %521 = vmatpush1.msra.mxu0 %v520
    %522 = vmatprep.subr.mxu0 0.0
    %v523 = vand.u32 %v47, 4294901760
    %v524 = vsub.f32 %v47, %v523
    %v525 = vand.u32 %v524, 4294901760
    %526 = vmatpush1.msra.mxu0 %v525
    %527 = vmatprep.subr.mxu0 0.0
    %v528 = vand.u32 %v48, 4294901760
    %v529 = vsub.f32 %v48, %v528
    %v530 = vand.u32 %v529, 4294901760
    %531 = vmatpush1.msra.mxu0 %v530
    %532 = vmatprep.subr.mxu0 0.0
    %v533 = vand.u32 %v49, 4294901760
    %v534 = vsub.f32 %v49, %v533
    %v535 = vand.u32 %v534, 4294901760
    %536 = vmatpush1.msra.mxu0 %v535
    %537 = vmatprep.subr.mxu0 0.0
    %v538 = vand.u32 %v50, 4294901760
    %v539 = vsub.f32 %v50, %v538
    %v540 = vand.u32 %v539, 4294901760
    %541 = vmatpush1.msra.mxu0 %v540
    %542 = vmatprep.subr.mxu0 0.0
    %v543 = vand.u32 %v51, 4294901760
    %v544 = vsub.f32 %v51, %v543
    %v545 = vand.u32 %v544, 4294901760
    %546 = vmatpush1.msra.mxu0 %v545
    %547 = vmatprep.subr.mxu0 0.0
    %v548 = vand.u32 %v52, 4294901760
    %v549 = vsub.f32 %v52, %v548
    %v550 = vand.u32 %v549, 4294901760
    %551 = vmatpush1.msra.mxu0 %v550
    %552 = vmatprep.subr.mxu0 0.0
    %v553 = vand.u32 %v53, 4294901760
    %v554 = vsub.f32 %v53, %v553
    %v555 = vand.u32 %v554, 4294901760
    %556 = vmatpush1.msra.mxu0 %v555
    %557 = vmatprep.subr.mxu0 0.0
    %v558 = vand.u32 %v54, 4294901760
    %v559 = vsub.f32 %v54, %v558
    %v560 = vand.u32 %v559, 4294901760
    %561 = vmatpush1.msra.mxu0 %v560
    %562 = vmatprep.subr.mxu0 0.0
    %v563 = vand.u32 %v55, 4294901760
    %v564 = vsub.f32 %v55, %v563
    %v565 = vand.u32 %v564, 4294901760
    %566 = vmatpush1.msra.mxu0 %v565
    %567 = vmatprep.subr.mxu0 0.0
    %v568 = vand.u32 %v56, 4294901760
    %v569 = vsub.f32 %v56, %v568
    %v570 = vand.u32 %v569, 4294901760
    %571 = vmatpush1.msra.mxu0 %v570
    %572 = vmatprep.subr.mxu0 0.0
    %573 = vmatpush1.msra.mxu0 0.0
    %574 = vmatprep.subr.mxu0 0.0
    %575 = vmatpush1.msra.mxu0 0.0
    %576 = vmatprep.subr.mxu0 0.0
    %577 = vmatpush1.msra.mxu0 0.0
    %578 = vmatprep.subr.mxu0 0.0
    %579 = vmatpush1.msra.mxu0 0.0
    %580 = vmatprep.subr.mxu0 0.0
    %581 = vmatpush1.msra.mxu0 0.0
    %582 = vmatprep.subr.mxu0 0.0
    %583 = vmatpush1.msra.mxu0 0.0
    %584 = vmatprep.subr.mxu0 0.0
    %585 = vmatpush1.msra.mxu0 0.0
    %586 = vmatprep.subr.mxu0 0.0
    %587 = vmatpush1.msra.mxu0 0.0
    %588 = vmatprep.subr.mxu0 0.0
    %589 = vmatpush1.msra.mxu0 0.0
    %590 = vmatprep.subr.mxu0 0.0
    %591 = vmatpush1.msra.mxu0 0.0
    %592 = vmatprep.subr.mxu0 0.0
    %593 = vmatpush1.msra.mxu0 0.0
    %594 = vmatprep.subr.mxu0 0.0
    %595 = vmatpush1.msra.mxu0 0.0
    %596 = vmatprep.subr.mxu0 0.0
    %597 = vmatpush1.msra.mxu0 0.0
    %598 = vmatprep.subr.mxu0 0.0
    %599 = vmatpush1.msra.mxu0 0.0
    %600 = vmatprep.subr.mxu0 0.0
    %601 = vmatpush1.msra.mxu0 0.0
    %602 = vmatprep.subr.mxu0 0.0
    %603 = vmatpush1.msra.mxu0 0.0
    %604 = vmatprep.mubr.f32.mxu0 0.0
    %v605 = vand.u32 %v40, 4294901760
    %606 = vmatmul.mubr.f32.gmra.mrb[0].mxu0 %v605
    %v607 = vpop.f32.mrb[0].mxu0
    %v608 = vadd.f32 %v489, %v607
    %v609 = vpop.f32.mrb[0].mxu0
    %610 = vdwg.mxu0
    %611 = vmatprep.subr.mxu0 0.0
    %v612 = vand.u32 %v41, 4294901760
    %613 = vmatpush1.msra.mxu0 %v612
    %614 = vmatprep.subr.mxu0 0.0
    %v615 = vand.u32 %v42, 4294901760
    %616 = vmatpush1.msra.mxu0 %v615
    %617 = vmatprep.subr.mxu0 0.0
    %v618 = vand.u32 %v43, 4294901760
    %619 = vmatpush1.msra.mxu0 %v618
    %620 = vmatprep.subr.mxu0 0.0
    %v621 = vand.u32 %v44, 4294901760
    %622 = vmatpush1.msra.mxu0 %v621
    %623 = vmatprep.subr.mxu0 0.0
    %v624 = vand.u32 %v45, 4294901760
    %625 = vmatpush1.msra.mxu0 %v624
    %626 = vmatprep.subr.mxu0 0.0
    %v627 = vand.u32 %v46, 4294901760
    %628 = vmatpush1.msra.mxu0 %v627
    %629 = vmatprep.subr.mxu0 0.0
    %v630 = vand.u32 %v47, 4294901760
    %631 = vmatpush1.msra.mxu0 %v630
    %632 = vmatprep.subr.mxu0 0.0
    %v633 = vand.u32 %v48, 4294901760
    %634 = vmatpush1.msra.mxu0 %v633
    %635 = vmatprep.subr.mxu0 0.0
    %v636 = vand.u32 %v49, 4294901760
    %637 = vmatpush1.msra.mxu0 %v636
    %638 = vmatprep.subr.mxu0 0.0
    %v639 = vand.u32 %v50, 4294901760
    %640 = vmatpush1.msra.mxu0 %v639
    %641 = vmatprep.subr.mxu0 0.0
    %v642 = vand.u32 %v51, 4294901760
    %643 = vmatpush1.msra.mxu0 %v642
    %644 = vmatprep.subr.mxu0 0.0
    %v645 = vand.u32 %v52, 4294901760
    %646 = vmatpush1.msra.mxu0 %v645
    %647 = vmatprep.subr.mxu0 0.0
    %v648 = vand.u32 %v53, 4294901760
    %649 = vmatpush1.msra.mxu0 %v648
    %650 = vmatprep.subr.mxu0 0.0
    %v651 = vand.u32 %v54, 4294901760
    %652 = vmatpush1.msra.mxu0 %v651
    %653 = vmatprep.subr.mxu0 0.0
    %v654 = vand.u32 %v55, 4294901760
    %655 = vmatpush1.msra.mxu0 %v654
    %656 = vmatprep.subr.mxu0 0.0
    %v657 = vand.u32 %v56, 4294901760
    %658 = vmatpush1.msra.mxu0 %v657
    %659 = vmatprep.subr.mxu0 0.0
    %660 = vmatpush1.msra.mxu0 0.0
    %661 = vmatprep.subr.mxu0 0.0
    %662 = vmatpush1.msra.mxu0 0.0
    %663 = vmatprep.subr.mxu0 0.0
    %664 = vmatpush1.msra.mxu0 0.0
    %665 = vmatprep.subr.mxu0 0.0
    %666 = vmatpush1.msra.mxu0 0.0
    %667 = vmatprep.subr.mxu0 0.0
    %668 = vmatpush1.msra.mxu0 0.0
    %669 = vmatprep.subr.mxu0 0.0
    %670 = vmatpush1.msra.mxu0 0.0
    %671 = vmatprep.subr.mxu0 0.0
    %672 = vmatpush1.msra.mxu0 0.0
    %673 = vmatprep.subr.mxu0 0.0
    %674 = vmatpush1.msra.mxu0 0.0
    %675 = vmatprep.subr.mxu0 0.0
    %676 = vmatpush1.msra.mxu0 0.0
    %677 = vmatprep.subr.mxu0 0.0
    %678 = vmatpush1.msra.mxu0 0.0
    %679 = vmatprep.subr.mxu0 0.0
    %680 = vmatpush1.msra.mxu0 0.0
    %681 = vmatprep.subr.mxu0 0.0
    %682 = vmatpush1.msra.mxu0 0.0
    %683 = vmatprep.subr.mxu0 0.0
    %684 = vmatpush1.msra.mxu0 0.0
    %685 = vmatprep.subr.mxu0 0.0
    %686 = vmatpush1.msra.mxu0 0.0
    %687 = vmatprep.subr.mxu0 0.0
    %688 = vmatpush1.msra.mxu0 0.0
    %689 = vmatprep.subr.mxu0 0.0
    %690 = vmatpush1.msra.mxu0 0.0
    %691 = vmatprep.mubr.f32.mxu0 0.0
    %v692 = vand.u32 %v40, 4294901760
    %693 = vmatmul.mubr.f32.gmra.mrb[0].mxu0 %v692
    %v694 = vpop.f32.mrb[0].mxu0
    %v695 = vadd.f32 %v608, %v694
    %v696 = vpop.f32.mrb[0].mxu0
    %697 = vdwg.mxu0
    %v698 = vrcp.pop %v695
    %v699 = vmul.f32 %v695, %v698
    %v700 = vsub.f32 2.0, %v699
    %v701 = vmul.f32 %v698, %v700
    %v702 = vmul.f32 %v40, %v701
    %703 = vst [vmem:[#allocation7] sm:$0xf] %v702
    // Predicated region
    $region18: #{tpu_custom_call.1} parent=1 // pred_check
      _
    $region19: #{tpu_custom_call.1} parent=1 // pred_check_branch
      %705 = sbr.rel (0) target = $region21
    $region20: #{tpu_custom_call.1} parent=1 // pred_region
      %s707 = ssub.s32 64, 64
      %708 = vsyncadd [#allocation4], %s707
      %s710 = sshll.u32 [#allocation7], 4
      %s711 = int_to_ptr.vmem [resolvable:$true] %s710
      %713 = dma.vmem_to_hbm [thread:$0]  %s711, 64, %s2, [#allocation4]
    $region21: #{tpu_custom_call.1} parent=1 // pred_fallthru
      _
    // Predicated region
    $region22: #{tpu_custom_call.1} parent=1 // pred_check
      _
    $region23: #{tpu_custom_call.1} parent=1 // pred_check_branch
      %715 = sbr.rel (0) target = $region25
    $region24: #{tpu_custom_call.1} parent=1 // pred_region
      %716 = dma.done [#allocation4], 64
    $region25: #{tpu_custom_call.1} parent=1 // pred_fallthru
      _
    %717 = vsyncpa [#allocation3], 1
    %718 = vsyncpa [#allocation6], 1
    %719 = vsyncpa [#allocation4], 1

</llo_original>
